<compile_context>
chip_gen: v7x
topology: tpu7x:2x2x1
jax: 0.10.0
libtpu: 0.0.40
codegen_flags: <defaults>
</compile_context>

<pallas_src>
import functools

import jax
import jax.numpy as jnp
from jax.experimental import pallas as pl
from jax.experimental.pallas import tpu as pltpu


def _prior_kernel(enc_ref, w1_ref, b1_ref, w2_ref, b2_ref, out_ref, acc_ref,
                  *, inv_s):
    """Streaming mean over S followed by the fused projections.

    enc_ref : (tS, tB, 2H) streamed block of encoded_src
    w1_ref  : (2H, L)      first linear weight (stored (in, out))
    b1_ref  : (1, L)
    w2_ref  : (L, P)       fused [wmu | wvar] weight, zero-padded to P lanes
    b2_ref  : (1, P)
    out_ref : (tB, P)      fused [mu | log_var] output slab
    acc_ref : (tB, 2H) f32 running sum over S (VMEM scratch)
    """
    s = pl.program_id(1)

    @pl.when(s == 0)
    def _():
        acc_ref[...] = jnp.zeros_like(acc_ref)

    # Streaming sum over the S-tile: reduce the leading axis -> (tB, 2H).
    # Accumulate in f32 even if the streamed input is bf16.
    acc_ref[...] += jnp.sum(enc_ref[...].astype(jnp.float32), axis=0)

    @pl.when(s == pl.num_programs(1) - 1)
    def _():
        # Mean over S: scale the small accumulator, not the streamed tensor.
        h_src = acc_ref[...] * inv_s
        # TODO(synk): dropout is identity here (eval mode); training-mode
        # dropout would need pltpu.prng_* masking.
        h_z = jnp.tanh(
            jnp.dot(h_src, w1_ref[...], preferred_element_type=jnp.float32)
            + b1_ref[...]
        )
        fused = (
            jnp.dot(h_z, w2_ref[...], preferred_element_type=jnp.float32)
            + b2_ref[...]
        )
        out_ref[...] = fused.astype(out_ref.dtype)


def _round_up(x, m):
    return ((x + m - 1) // m) * m


def _largest_divisor_leq(n, cap):
    cap = max(1, min(n, cap))
    for d in range(cap, 0, -1):
        if n % d == 0:
            return d
    return 1


def _pick_batch_tile(b):
    if b <= 256:
        return b
    for tb in range(256, 7, -8):
        if b % tb == 0:
            return tb
    return b


@jax.jit
def prior_forward(encoded_src, params):
    """encoded_src: (S, B, 2H), PyTorch axis convention (f32 or bf16).
    Returns (mu, log_var), each (B, L) float32."""
    S, B, F2 = encoded_src.shape
    w1, b1 = params["w1"], params["b1"]
    L = w1.shape[1]

    # Fuse mu/var projections into one lane-dense weight, padded to 128 lanes.
    P = _round_up(2 * L, 128)
    w2 = jnp.concatenate([params["wmu"], params["wvar"]], axis=1)  # (L, 2L)
    b2 = jnp.concatenate([params["bmu"], params["bvar"]], axis=1)  # (1, 2L)
    w2 = jnp.pad(w2, ((0, 0), (0, P - 2 * L)))
    b2 = jnp.pad(b2, ((0, 0), (0, P - 2 * L)))

    # Tile sizes: batch tile tB (full B for small batches, multiple of 8
    # otherwise); S tile sized to ~2 MiB per streamed block so double-buffered
    # inputs stay far under the scoped-VMEM limit on v5e/v6e/v7x.
    tB = _pick_batch_tile(B)
    bytes_per_row = tB * F2 * encoded_src.dtype.itemsize
    tS = _largest_divisor_leq(S, max(1, (2 << 20) // max(1, bytes_per_row)))

    n_b = B // tB
    n_s = S // tS
    inv_s = 1.0 / float(S)

    grid_spec = pltpu.PrefetchScalarGridSpec(
        num_scalar_prefetch=0,
        grid=(n_b, n_s),
        in_specs=[
            # Streamed activation block: (tS, tB, 2H), S axis last in the grid.
            pl.BlockSpec((tS, tB, F2), lambda b, s: (s, b, 0)),
            # Weights/biases: constant block indices -> stay resident in VMEM.
            pl.BlockSpec((F2, L), lambda b, s: (0, 0)),
            pl.BlockSpec((1, L), lambda b, s: (0, 0)),
            pl.BlockSpec((L, P), lambda b, s: (0, 0)),
            pl.BlockSpec((1, P), lambda b, s: (0, 0)),
        ],
        out_specs=pl.BlockSpec((tB, P), lambda b, s: (b, 0)),
        scratch_shapes=[pltpu.VMEM((tB, F2), jnp.float32)],
    )

    fused_out = pl.pallas_call(
        functools.partial(_prior_kernel, inv_s=inv_s),
        out_shape=jax.ShapeDtypeStruct((B, P), jnp.float32),
        grid_spec=grid_spec,
        compiler_params=pltpu.CompilerParams(
            dimension_semantics=("parallel", "arbitrary"),
        ),
    )(encoded_src, w1, b1, w2, b2)

    mu = fused_out[:, :L]
    log_var = fused_out[:, L:2 * L]
    return mu, log_var


def init_prior_params(hidden_size, latent_size, key):
    """Deterministic synthetic parameters. Weights stored as (in, out) so the
    kernel can do x @ W + b (torch nn.Linear stores (out, in))."""
    k1, k2, k3, k4, k5, k6 = jax.random.split(key, 6)
    two_h = 2 * hidden_size
    s1 = 1.0 / jnp.sqrt(two_h)
    s2 = 1.0 / jnp.sqrt(latent_size)
    params = {
        "w1": jax.random.uniform(k1, (two_h, latent_size), jnp.float32, -s1, s1),
        "b1": jax.random.uniform(k2, (1, latent_size), jnp.float32, -s1, s1),
        "wmu": jax.random.uniform(k3, (latent_size, latent_size), jnp.float32, -s2, s2),
        "bmu": jax.random.uniform(k4, (1, latent_size), jnp.float32, -s2, s2),
        "wvar": jax.random.uniform(k5, (latent_size, latent_size), jnp.float32, -s2, s2),
        "bvar": jax.random.uniform(k6, (1, latent_size), jnp.float32, -s2, s2),
    }
    return params


def prior_forward_reference(encoded_src, params):
    """Pure-JAX reference mirroring the torch forward (eval mode)."""
    enc = jnp.transpose(encoded_src, (1, 0, 2)).astype(jnp.float32)  # (B, S, 2H)
    h_src = jnp.mean(enc, axis=1)                                    # avg_pool1d over S
    h_z = jnp.tanh(h_src @ params["w1"] + params["b1"])
    mu = h_z @ params["wmu"] + params["bmu"]
    log_var = h_z @ params["wvar"] + params["bvar"]
    return mu, log_var


if __name__ == "__main__":
    hidden_size = 32
    latent_size = 32
    batch = 2
    seq = 8

    key = jax.random.PRNGKey(0)
    k_enc, k_src, k_params = jax.random.split(key, 3)

    # encoded_src follows the PyTorch (seq, batch, 2*hidden) convention.
    encoded_src = jax.random.normal(k_enc, (seq, batch, 2 * hidden_size), jnp.float32)
    # src is unused by the forward pass; create it only for shape fidelity.
    src = jax.random.randint(k_src, (seq, batch), 0, 100)

    params = init_prior_params(hidden_size, latent_size, k_params)

    mu, log_var = prior_forward(encoded_src, params)
    jax.block_until_ready((mu, log_var))

    mu_ref, lv_ref = prior_forward_reference(encoded_src, params)
    assert mu.shape == (batch, latent_size) and log_var.shape == (batch, latent_size)
    assert jnp.allclose(mu, mu_ref, atol=1e-5, rtol=1e-5)
    assert jnp.allclose(log_var, lv_ref, atol=1e-5, rtol=1e-5)

    print("KERNEL_OK")
</pallas_src>

<mosaic_0001>
module attributes {stable_mosaic.version = 11 : i64} {
  func.func @_prior_kernel(%arg0: i32, %arg1: i32, %arg2: memref<8x2x64xf32, #tpu.memory_space<vmem>>, %arg3: memref<64x32xf32, #tpu.memory_space<vmem>>, %arg4: memref<1x32xf32, #tpu.memory_space<vmem>>, %arg5: memref<32x128xf32, #tpu.memory_space<vmem>>, %arg6: memref<1x128xf32, #tpu.memory_space<vmem>>, %arg7: memref<2x128xf32, #tpu.memory_space<vmem>>, %arg8: memref<2x64xf32, #tpu.memory_space<vmem>>) attributes {dimension_semantics = [#tpu.dimension_semantics<parallel>, #tpu.dimension_semantics<arbitrary>], iteration_bounds = array<i64: 1, 1>, scalar_prefetch = 0 : i64, scratch_operands = 1 : i64, tpu.core_type = #tpu.core_type<tc>, window_params = [{transform_indices = @transform_0, window_bounds = array<i64: 8, 2, 64>}, {pipeline_mode = #tpu.pipeline_mode<synchronous>, transform_indices = @transform_1, window_bounds = array<i64: 64, 32>}, {pipeline_mode = #tpu.pipeline_mode<synchronous>, transform_indices = @transform_2, window_bounds = array<i64: 1, 32>}, {pipeline_mode = #tpu.pipeline_mode<synchronous>, transform_indices = @transform_3, window_bounds = array<i64: 32, 128>}, {pipeline_mode = #tpu.pipeline_mode<synchronous>, transform_indices = @transform_4, window_bounds = array<i64: 1, 128>}, {transform_indices = @transform_5, window_bounds = array<i64: 2, 128>}]} {
    %c0_i32 = arith.constant 0 : i32
    %0 = arith.cmpi eq, %arg1, %c0_i32 : i32
    %1 = arith.extui %0 : i1 to i32
    %c0_i32_0 = arith.constant 0 : i32
    %2 = arith.cmpi ne, %1, %c0_i32_0 : i32
    scf.if %2 {
      %cst_9 = arith.constant 0.000000e+00 : f32
      %11 = vector.broadcast %cst_9 : f32 to vector<2x64xf32>
      %c0_10 = arith.constant 0 : index
      %c0_11 = arith.constant 0 : index
      %12 = vector.load %arg8[%c0_10, %c0_11] : memref<2x64xf32, #tpu.memory_space<vmem>>, vector<2x64xf32>
      tpu.vector_store %arg8[%c0_10, %c0_11], %11 {strides = array<i32>} : memref<2x64xf32, #tpu.memory_space<vmem>>, vector<2x64xf32>,
    } else {
    }
    %c0 = arith.constant 0 : index
    %c0_1 = arith.constant 0 : index
    %3 = vector.load %arg8[%c0, %c0_1] : memref<2x64xf32, #tpu.memory_space<vmem>>, vector<2x64xf32>
    %c0_2 = arith.constant 0 : index
    %c0_3 = arith.constant 0 : index
    %c0_4 = arith.constant 0 : index
    %4 = vector.load %arg2[%c0_2, %c0_3, %c0_4] : memref<8x2x64xf32, #tpu.memory_space<vmem>>, vector<8x2x64xf32>
    %cst = arith.constant dense<0.000000e+00> : vector<2x64xf32>
    %5 = vector.multi_reduction <add>, %4, %cst [0] : vector<8x2x64xf32> to vector<2x64xf32>
    %6 = arith.addf %3, %5 : vector<2x64xf32>
    %c0_5 = arith.constant 0 : index
    %c0_6 = arith.constant 0 : index
    %7 = vector.load %arg8[%c0_5, %c0_6] : memref<2x64xf32, #tpu.memory_space<vmem>>, vector<2x64xf32>
    tpu.vector_store %arg8[%c0_5, %c0_6], %6 {strides = array<i32>} : memref<2x64xf32, #tpu.memory_space<vmem>>, vector<2x64xf32>,
    %c0_i32_7 = arith.constant 0 : i32
    %8 = arith.cmpi eq, %arg1, %c0_i32_7 : i32
    %9 = arith.extui %8 : i1 to i32
    %c0_i32_8 = arith.constant 0 : i32
    %10 = arith.cmpi ne, %9, %c0_i32_8 : i32
    scf.if %10 {
      %c0_9 = arith.constant 0 : index
      %c0_10 = arith.constant 0 : index
      %11 = vector.load %arg8[%c0_9, %c0_10] : memref<2x64xf32, #tpu.memory_space<vmem>>, vector<2x64xf32>
      %cst_11 = arith.constant 1.250000e-01 : f32
      %12 = vector.broadcast %cst_11 : f32 to vector<2x64xf32>
      %13 = arith.mulf %11, %12 : vector<2x64xf32>
      %c0_12 = arith.constant 0 : index
      %c0_13 = arith.constant 0 : index
      %14 = vector.load %arg3[%c0_12, %c0_13] : memref<64x32xf32, #tpu.memory_space<vmem>>, vector<64x32xf32>
      %cst_14 = arith.constant dense<0.000000e+00> : vector<2x32xf32>
      %15 = tpu.matmul %13, %14, %cst_14 {dimension_numbers = #tpu.dot_dimension_numbers<[1], [0], [0], [1], [0, 0, 1, 1], [], []>} : vector<2x64xf32>, vector<64x32xf32>, vector<2x32xf32> -> vector<2x32xf32>
      %c0_15 = arith.constant 0 : index
      %c0_16 = arith.constant 0 : index
      %16 = vector.load %arg4[%c0_15, %c0_16] : memref<1x32xf32, #tpu.memory_space<vmem>>, vector<1x32xf32>
      %17 = vector.broadcast %16 : vector<1x32xf32> to vector<2x32xf32>
      %18 = arith.addf %15, %17 : vector<2x32xf32>
      %19 = math.tanh %18 : vector<2x32xf32>
      %c0_17 = arith.constant 0 : index
      %c0_18 = arith.constant 0 : index
      %20 = vector.load %arg5[%c0_17, %c0_18] : memref<32x128xf32, #tpu.memory_space<vmem>>, vector<32x128xf32>
      %cst_19 = arith.constant dense<0.000000e+00> : vector<2x128xf32>
      %21 = tpu.matmul %19, %20, %cst_19 {dimension_numbers = #tpu.dot_dimension_numbers<[1], [0], [0], [1], [0, 0, 1, 1], [], []>} : vector<2x32xf32>, vector<32x128xf32>, vector<2x128xf32> -> vector<2x128xf32>
      %c0_20 = arith.constant 0 : index
      %c0_21 = arith.constant 0 : index
      %22 = vector.load %arg6[%c0_20, %c0_21] : memref<1x128xf32, #tpu.memory_space<vmem>>, vector<1x128xf32>
      %23 = vector.broadcast %22 : vector<1x128xf32> to vector<2x128xf32>
      %24 = arith.addf %21, %23 : vector<2x128xf32>
      %c0_22 = arith.constant 0 : index
      %c0_23 = arith.constant 0 : index
      %25 = vector.load %arg7[%c0_22, %c0_23] : memref<2x128xf32, #tpu.memory_space<vmem>>, vector<2x128xf32>
      tpu.vector_store %arg7[%c0_22, %c0_23], %24 {strides = array<i32>} : memref<2x128xf32, #tpu.memory_space<vmem>>, vector<2x128xf32>,
    } else {
    }
    return
  }
  func.func @transform_0(%arg0: i32, %arg1: i32) -> (i32, i32, i32) {
    %c0_i32 = arith.constant 0 : i32
    %c0_i32_0 = arith.constant 0 : i32
    return %arg1, %arg0, %c0_i32 : i32, i32, i32
  }
  func.func @transform_1(%arg0: i32, %arg1: i32) -> (i32, i32) {
    %c0_i32 = arith.constant 0 : i32
    %c0_i32_0 = arith.constant 0 : i32
    %c0_i32_1 = arith.constant 0 : i32
    return %c0_i32, %c0_i32_0 : i32, i32
  }
  func.func @transform_2(%arg0: i32, %arg1: i32) -> (i32, i32) {
    %c0_i32 = arith.constant 0 : i32
    %c0_i32_0 = arith.constant 0 : i32
    %c0_i32_1 = arith.constant 0 : i32
    return %c0_i32, %c0_i32_0 : i32, i32
  }
  func.func @transform_3(%arg0: i32, %arg1: i32) -> (i32, i32) {
    %c0_i32 = arith.constant 0 : i32
    %c0_i32_0 = arith.constant 0 : i32
    %c0_i32_1 = arith.constant 0 : i32
    return %c0_i32, %c0_i32_0 : i32, i32
  }
  func.func @transform_4(%arg0: i32, %arg1: i32) -> (i32, i32) {
    %c0_i32 = arith.constant 0 : i32
    %c0_i32_0 = arith.constant 0 : i32
    %c0_i32_1 = arith.constant 0 : i32
    return %c0_i32, %c0_i32_0 : i32, i32
  }
  func.func @transform_5(%arg0: i32, %arg1: i32) -> (i32, i32) {
    %c0_i32 = arith.constant 0 : i32
    %c0_i32_0 = arith.constant 0 : i32
    return %arg0, %c0_i32 : i32, i32
  }
}

</mosaic_0001>

<llo_original>
// kernel: prior_forward.1
$region0: #{prior_forward.1}
  #allocation0 [shape = 'u32[]', space=smem, size = 0x4, offset = 0x4, fixed_abs, tag = 'smem constant byte address 0x4 - core index']
  #allocation1 [shape = 'u32[144,128]{1,0:T(1,128)}', space=vmem, size = 0x12000, scoped, tag = 'internal scratch']
  #allocation2 [shape = 'f32[2,64]{1,0:T(2,128)}', space=vmem, size = 0x400, scoped, tag = 'scratch operand']
  %s0 = inlined_call_operand.vmem [shape: f32[8,2,64], index: 0, kind: input, shape index: {}]
  %s1 = inlined_call_operand.vmem [shape: f32[64,32], index: 1, kind: input, shape index: {}]
  %s2 = inlined_call_operand.vmem [shape: f32[1,32], index: 2, kind: input, shape index: {}]
  %s3 = inlined_call_operand.vmem [shape: f32[32,128], index: 3, kind: input, shape index: {}]
  %s4 = inlined_call_operand.vmem [shape: f32[1,128], index: 4, kind: input, shape index: {}]
  %s5 = inlined_call_operand.vmem [shape: f32[2,128], index: 5, kind: output, shape index: {}]
  %s6 = sld [smem:[#allocation0]]
  $region38: #{prior_forward.1} parent=0
    _
  %s8 = ssub.s32 1, %s6
  %s9 = scalar_select 0, %s8, %s6
  // Predicated region
  $region2: #{prior_forward.1} parent=0 // pred_check
    _
  $region3: #{prior_forward.1} parent=0 // pred_check_branch
    %11 = sbr.rel (0) target = $region5
  $region4: #{prior_forward.1} parent=0 // pred_region
    _
  $region5: #{prior_forward.1} parent=0 // pred_fallthru
    _
  // Predicated region
  $region6: #{prior_forward.1} parent=0 // pred_check
    _
  $region7: #{prior_forward.1} parent=0 // pred_check_branch
    %13 = sbr.rel (0) target = $region9
  $region8: #{prior_forward.1} parent=0 // pred_region
    _
  $region9: #{prior_forward.1} parent=0 // pred_fallthru
    _
  // Predicated region
  $region10: #{prior_forward.1} parent=0 // pred_check
    _
  $region11: #{prior_forward.1} parent=0 // pred_check_branch
    %15 = sbr.rel (0) target = $region13
  $region12: #{prior_forward.1} parent=0 // pred_region
    _
  $region13: #{prior_forward.1} parent=0 // pred_fallthru
    _
  // Predicated region
  $region14: #{prior_forward.1} parent=0 // pred_check
    _
  $region15: #{prior_forward.1} parent=0 // pred_check_branch
    %17 = sbr.rel (0) target = $region17
  $region16: #{prior_forward.1} parent=0 // pred_region
    _
  $region17: #{prior_forward.1} parent=0 // pred_fallthru
    _
  // Predicated region
  $region18: #{prior_forward.1} parent=0 // pred_check
    _
  $region19: #{prior_forward.1} parent=0 // pred_check_branch
    %19 = sbr.rel (0) target = $region21
  $region20: #{prior_forward.1} parent=0 // pred_region
    _
  $region21: #{prior_forward.1} parent=0 // pred_fallthru
    _
  %p20 = scmp.eq.s32.totalorder 0, 0
  // Predicated region
  $region22: #{prior_forward.1} parent=0 // pred_check
    %p21 = pneg %p20
  $region23: #{prior_forward.1} parent=0 // pred_check_branch
    %23 = sbr.rel (%p21) target = $region25
  $region24: #{prior_forward.1} parent=0 // pred_region
    %vm24 = vcmask 517120
    %25 = vst.msk [vmem:[#allocation2] sm:$0x3] %vm24, 0.0
  $region25: #{prior_forward.1} parent=0 // pred_fallthru
    _
  %v26 = vld [vmem:[#allocation2] sm:$0x3]
  %v27 = vld [vmem:[%s0] sm:$0x3]
  %v28 = vld [vmem:[%s0 + $0x2] sm:$0x3]
  %v29 = vld [vmem:[%s0 + $0x4] sm:$0x3]
  %v30 = vld [vmem:[%s0 + $0x6] sm:$0x3]
  %v31 = vld [vmem:[%s0 + $0x8] sm:$0x3]
  %v32 = vld [vmem:[%s0 + $0xa] sm:$0x3]
  %v33 = vld [vmem:[%s0 + $0xc] sm:$0x3]
  %v34 = vld [vmem:[%s0 + $0xe] sm:$0x3]
  %vm35 = vcmask 517120
  %v36 = vsel %vm35, %v27, 0.0
  %v37 = vsel %vm35, %v28, 0.0
  %v38 = vadd.f32 %v36, %v37
  %v39 = vsel %vm35, %v29, 0.0
  %v40 = vadd.f32 %v38, %v39
  %v41 = vsel %vm35, %v30, 0.0
  %v42 = vadd.f32 %v40, %v41
  %v43 = vsel %vm35, %v31, 0.0
  %v44 = vadd.f32 %v42, %v43
  %v45 = vsel %vm35, %v32, 0.0
  %v46 = vadd.f32 %v44, %v45
  %v47 = vsel %vm35, %v33, 0.0
  %v48 = vadd.f32 %v46, %v47
  %v49 = vsel %vm35, %v34, 0.0
  %v50 = vadd.f32 %v48, %v49
  %v51 = vadd.f32 %v26, %v50
  %52 = vst.msk [vmem:[#allocation2] sm:$0x3] %vm35, %v51
  // Predicated region
  $region26: #{prior_forward.1} parent=0 // pred_check
    %p53 = pneg %p20
  $region27: #{prior_forward.1} parent=0 // pred_check_branch
    %55 = sbr.rel (%p53) target = $region29
  $region28: #{prior_forward.1} parent=0 // pred_region
    %v56 = vld [vmem:[#allocation2] sm:$0x3]
    %v57 = vmul.f32 %v56, 0.125
    %v58 = vld [vmem:[%s1] sm:$0xff]
    %v59 = vld [vmem:[%s1 + $0x8] sm:$0xff]
    %v60 = vld [vmem:[%s1 + $0x10] sm:$0xff]
    %v61 = vld [vmem:[%s1 + $0x18] sm:$0xff]
    %v62 = vld [vmem:[%s1 + $0x20] sm:$0xff]
    %v63 = vld [vmem:[%s1 + $0x28] sm:$0xff]
    %v64 = vld [vmem:[%s1 + $0x30] sm:$0xff]
    %v65 = vld [vmem:[%s1 + $0x38] sm:$0xff]
    %v66 = vld [vmem:[%s2] sm:$0x1]
    %v68 = vlaneseq
    %v69 = vshrl.u32 %v68, 7
    %v70 = vsub.s32 0, %v69
    %v71 = vrot.slane %v66, %v70
    %vm73 = vcmask 523264
    %v75 = vsel %vm73, %v57, 0
    %77 = vmatprep.subr.mxu0 0.0
    %78 = vmatpush1.msra.mxu0 %v58
    %79 = vmatprep.subr.mxu0 0.0
    %80 = vmatpush1.msra.mxu0 %v59
    %81 = vmatprep.subr.mxu0 0.0
    %82 = vmatpush1.msra.mxu0 %v60
    %83 = vmatprep.subr.mxu0 0.0
    %84 = vmatpush1.msra.mxu0 %v61
    %85 = vmatprep.subr.mxu0 0.0
    %86 = vmatpush1.msra.mxu0 %v62
    %87 = vmatprep.subr.mxu0 0.0
    %88 = vmatpush1.msra.mxu0 %v63
    %89 = vmatprep.subr.mxu0 0.0
    %90 = vmatpush1.msra.mxu0 %v64
    %91 = vmatprep.subr.mxu0 0.0
    %92 = vmatpush1.msra.mxu0 %v65
    %93 = vmatprep.subr.mxu0 0.0
    %94 = vmatpush1.msra.mxu0 0.0
    %95 = vmatprep.subr.mxu0 0.0
    %96 = vmatpush1.msra.mxu0 0.0
    %97 = vmatprep.subr.mxu0 0.0
    %98 = vmatpush1.msra.mxu0 0.0
    %99 = vmatprep.subr.mxu0 0.0
    %100 = vmatpush1.msra.mxu0 0.0
    %101 = vmatprep.subr.mxu0 0.0
    %102 = vmatpush1.msra.mxu0 0.0
    %103 = vmatprep.subr.mxu0 0.0
    %104 = vmatpush1.msra.mxu0 0.0
    %105 = vmatprep.subr.mxu0 0.0
    %106 = vmatpush1.msra.mxu0 0.0
    %107 = vmatprep.subr.mxu0 0.0
    %108 = vmatpush1.msra.mxu0 0.0
    %109 = vmatprep.subr.mxu0 0.0
    %110 = vmatpush1.msra.mxu0 0.0
    %111 = vmatprep.subr.mxu0 0.0
    %112 = vmatpush1.msra.mxu0 0.0
    %113 = vmatprep.subr.mxu0 0.0
    %114 = vmatpush1.msra.mxu0 0.0
    %115 = vmatprep.subr.mxu0 0.0
    %116 = vmatpush1.msra.mxu0 0.0
    %117 = vmatprep.subr.mxu0 0.0
    %118 = vmatpush1.msra.mxu0 0.0
    %119 = vmatprep.subr.mxu0 0.0
    %120 = vmatpush1.msra.mxu0 0.0
    %121 = vmatprep.subr.mxu0 0.0
    %122 = vmatpush1.msra.mxu0 0.0
    %123 = vmatprep.subr.mxu0 0.0
    %124 = vmatpush1.msra.mxu0 0.0
    %125 = vmatprep.subr.mxu0 0.0
    %126 = vmatpush1.msra.mxu0 0.0
    %127 = vmatprep.subr.mxu0 0.0
    %128 = vmatpush1.msra.mxu0 0.0
    %129 = vmatprep.subr.mxu0 0.0
    %130 = vmatpush1.msra.mxu0 0.0
    %131 = vmatprep.subr.mxu0 0.0
    %132 = vmatpush1.msra.mxu0 0.0
    %133 = vmatprep.subr.mxu0 0.0
    %134 = vmatpush1.msra.mxu0 0.0
    %135 = vmatprep.subr.mxu0 0.0
    %136 = vmatpush1.msra.mxu0 0.0
    %137 = vmatprep.subr.mxu0 0.0
    %138 = vmatpush1.msra.mxu0 0.0
    %139 = vmatprep.subr.mxu0 0.0
    %140 = vmatpush1.msra.mxu0 0.0
    %141 = vmatprep.mubr.f32.mxu0 0.0
    %142 = vmatmul.mubr.f32.gmra.mrb[0].mxu0 %v75
    %v143 = vpop.f32.mrb[0].mxu0
    %v144 = vadd.f32 %v71, %v143
    %v145 = vpop.f32.mrb[0].mxu0
    %146 = vdwg.mxu0
    %v147 = vtanh.pop %v144
    %v148 = vld [vmem:[%s3] sm:$0xff]
    %v149 = vld [vmem:[%s3 + $0x8] sm:$0xff]
    %v150 = vld [vmem:[%s3 + $0x10] sm:$0xff]
    %v151 = vld [vmem:[%s3 + $0x18] sm:$0xff]
    %v152 = vld [vmem:[%s4] sm:$0x1]
    %v154 = vlaneseq
    %v155 = vshrl.u32 %v154, 7
    %v156 = vsub.s32 0, %v155
    %v157 = vrot.slane %v152, %v156
    %vm159 = vcmask 261120
    %v161 = vsel %vm159, %v147, 0
    %163 = vmatprep.subr.mxu0 0.0
    %164 = vmatpush1.msra.mxu0 %v148
    %165 = vmatprep.subr.mxu0 0.0
    %166 = vmatpush1.msra.mxu0 %v149
    %167 = vmatprep.subr.mxu0 0.0
    %168 = vmatpush1.msra.mxu0 %v150
    %169 = vmatprep.subr.mxu0 0.0
    %170 = vmatpush1.msra.mxu0 %v151
    %171 = vmatprep.subr.mxu0 0.0
    %172 = vmatpush1.msra.mxu0 0.0
    %173 = vmatprep.subr.mxu0 0.0
    %174 = vmatpush1.msra.mxu0 0.0
    %175 = vmatprep.subr.mxu0 0.0
    %176 = vmatpush1.msra.mxu0 0.0
    %177 = vmatprep.subr.mxu0 0.0
    %178 = vmatpush1.msra.mxu0 0.0
    %179 = vmatprep.subr.mxu0 0.0
    %180 = vmatpush1.msra.mxu0 0.0
    %181 = vmatprep.subr.mxu0 0.0
    %182 = vmatpush1.msra.mxu0 0.0
    %183 = vmatprep.subr.mxu0 0.0
    %184 = vmatpush1.msra.mxu0 0.0
    %185 = vmatprep.subr.mxu0 0.0
    %186 = vmatpush1.msra.mxu0 0.0
    %187 = vmatprep.subr.mxu0 0.0
    %188 = vmatpush1.msra.mxu0 0.0
    %189 = vmatprep.subr.mxu0 0.0
    %190 = vmatpush1.msra.mxu0 0.0
    %191 = vmatprep.subr.mxu0 0.0
    %192 = vmatpush1.msra.mxu0 0.0
    %193 = vmatprep.subr.mxu0 0.0
    %194 = vmatpush1.msra.mxu0 0.0
    %195 = vmatprep.subr.mxu0 0.0
    %196 = vmatpush1.msra.mxu0 0.0
    %197 = vmatprep.subr.mxu0 0.0
    %198 = vmatpush1.msra.mxu0 0.0
    %199 = vmatprep.subr.mxu0 0.0
    %200 = vmatpush1.msra.mxu0 0.0
    %201 = vmatprep.subr.mxu0 0.0
    %202 = vmatpush1.msra.mxu0 0.0
    %203 = vmatprep.subr.mxu0 0.0
    %204 = vmatpush1.msra.mxu0 0.0
    %205 = vmatprep.subr.mxu0 0.0
    %206 = vmatpush1.msra.mxu0 0.0
    %207 = vmatprep.subr.mxu0 0.0
    %208 = vmatpush1.msra.mxu0 0.0
    %209 = vmatprep.subr.mxu0 0.0
    %210 = vmatpush1.msra.mxu0 0.0
    %211 = vmatprep.subr.mxu0 0.0
    %212 = vmatpush1.msra.mxu0 0.0
    %213 = vmatprep.subr.mxu0 0.0
    %214 = vmatpush1.msra.mxu0 0.0
    %215 = vmatprep.subr.mxu0 0.0
    %216 = vmatpush1.msra.mxu0 0.0
    %217 = vmatprep.subr.mxu0 0.0
    %218 = vmatpush1.msra.mxu0 0.0
    %219 = vmatprep.subr.mxu0 0.0
    %220 = vmatpush1.msra.mxu0 0.0
    %221 = vmatprep.subr.mxu0 0.0
    %222 = vmatpush1.msra.mxu0 0.0
    %223 = vmatprep.subr.mxu0 0.0
    %224 = vmatpush1.msra.mxu0 0.0
    %225 = vmatprep.subr.mxu0 0.0
    %226 = vmatpush1.msra.mxu0 0.0
    %227 = vmatprep.mubr.f32.mxu0 0.0
    %228 = vmatmul.mubr.f32.gmra.mrb[0].mxu0 %v161
    %v229 = vpop.f32.mrb[0].mxu0
    %v230 = vadd.f32 %v157, %v229
    %v231 = vpop.f32.mrb[0].mxu0
    %232 = vdwg.mxu0
    %233 = vst [vmem:[%s5] sm:$0x3] %v230
  $region29: #{prior_forward.1} parent=0 // pred_fallthru
    _
  // Predicated region
  $region30: #{prior_forward.1} parent=0 // pred_check
    _
  $region31: #{prior_forward.1} parent=0 // pred_check_branch
    %235 = sbr.rel (0) target = $region33
  $region32: #{prior_forward.1} parent=0 // pred_region
    _
  $region33: #{prior_forward.1} parent=0 // pred_fallthru
    _
  // Predicated region
  $region34: #{prior_forward.1} parent=0 // pred_check
    _
  $region35: #{prior_forward.1} parent=0 // pred_check_branch
    %237 = sbr.rel (0) target = $region37
  $region36: #{prior_forward.1} parent=0 // pred_region
    _
  $region37: #{prior_forward.1} parent=0 // pred_fallthru
    _

</llo_original>
